<compile_context>
chip_gen: v6e
topology: v6e:2x2x1
jax: 0.10.0
libtpu: 0.0.40
codegen_flags: <defaults>
</compile_context>

<pallas_src>
import functools

import jax
import jax.numpy as jnp
from jax import lax
from jax.experimental import pallas as pl
from jax.experimental.pallas import tpu as pltpu


def _conv3x3_kernel(x_ref, w_ref, b_ref, o_ref, *, N, Cin, Cout, H, W):
    """3x3 'same' conv over the whole batch, spatial-in-lanes, VPU FMA.

    x_ref: (N*Cin, H*W)     VMEM  - NCHW with (N,C) and (H,W) collapsed
    w_ref: (N*Cin, 9*Cout)  VMEM  - f32; row n*Cin+ci, col tap*Cout+co holds
                                    weight[ky, kx, ci, co] with tap = ky*3+kx
    b_ref: (Cout,)          SMEM  - f32 bias
    o_ref: (N*Cout, H*W)    VMEM  - row n*Cout+co
    """
    HW = H * W
    R = N * Cin

    # Whole batched block, loaded once, lane-dense.
    xb = x_ref[...].astype(jnp.float32)                       # (R, HW)

    # Border masks for zero padding, built once at full block height so the
    # selects below are plain dense vreg ops (no broadcasts in the tap loop).
    lin = lax.broadcasted_iota(jnp.int32, (R, HW), 1)
    if W & (W - 1) == 0:
        col = lin & (W - 1)            # power-of-two W: cheap bitwise AND
    else:
        col = lax.rem(lin, W)          # general W fallback
    up_ok = lin >= W                   # y - 1 >= 0
    down_ok = lin < (H - 1) * W        # y + 1 <= H - 1
    left_ok = col >= 1                 # x - 1 >= 0
    right_ok = col < (W - 1)           # x + 1 <= W - 1

    # One f32 accumulator per output channel, full (N*Cin, HW) block.
    accs = [jnp.zeros((R, HW), jnp.float32) for _ in range(Cout)]

    # 9 taps: one XLU lane roll + one border select on the whole block, then a
    # per-output-channel (N*Cin,1)-column broadcast multiply-add on the VPU.
    for dy in (-1, 0, 1):
        row_ok = up_ok if dy == -1 else (down_ok if dy == 1 else None)
        for dx in (-1, 0, 1):
            col_ok = left_ok if dx == -1 else (right_ok if dx == 1 else None)
            if row_ok is None:
                ok = col_ok
            elif col_ok is None:
                ok = row_ok
            else:
                ok = jnp.logical_and(row_ok, col_ok)

            # shifted[i] = xb[i + dy*W + dx]  (wrapped values get masked out)
            shift = (-(dy * W + dx)) % HW
            t = pltpu.roll(xb, shift=shift, axis=1) if shift != 0 else xb
            if ok is not None:
                t = jnp.where(ok, t, 0.0)

            tap = (dy + 1) * 3 + (dx + 1)
            for co in range(Cout):
                k = tap * Cout + co
                wcol = w_ref[:, k:k + 1]                       # (R, 1) f32
                accs[co] = accs[co] + t * wcol

    # Fold Cin with a sublane sum per (batch, co), add bias, and store each
    # output row directly (lane-dense, no concatenate relayout).
    for n in range(N):
        for co in range(Cout):
            v = jnp.sum(accs[co][n * Cin:(n + 1) * Cin, :],
                        axis=0, keepdims=True) + b_ref[co]     # (1, HW)
            r = n * Cout + co
            o_ref[r:r + 1, :] = v.astype(o_ref.dtype)


def simple_gate_forward(x_nchw, weight_hwio, bias):
    """SimpleGate forward. x_nchw: (N, C, H, W) -> (N, C//2, H, W)."""
    N, C, H, W = x_nchw.shape
    Cout = weight_hwio.shape[-1]
    assert Cout == C // 2
    HW = H * W
    # Lane-dense store path relies on HW being a multiple of 128 (256 here);
    # at other shapes pad/regroup rows per strip before flattening.

    # chunk(2, dim=1) + cat(dim=1) == identity; go straight to the conv.
    # Contiguous-dim collapse only -> free bitcast, no transpose / no pad.
    x_flat = x_nchw.reshape(N * C, HW)

    # Weight column table: row n*Cin + ci, column tap*Cout + co.
    w_cols = weight_hwio.astype(jnp.float32).reshape(9, C, Cout)   # (tap, ci, co)
    w_cols = jnp.transpose(w_cols, (1, 0, 2)).reshape(C, 9 * Cout)  # (ci, tap*Cout+co)
    w_cols = jnp.tile(w_cols, (N, 1))                               # (N*C, 9*Cout)

    b_flat = bias.astype(jnp.float32).reshape(-1)

    out_flat = pl.pallas_call(
        functools.partial(_conv3x3_kernel, N=N, Cin=C, Cout=Cout, H=H, W=W),
        out_shape=jax.ShapeDtypeStruct((N * Cout, HW), x_nchw.dtype),
        in_specs=[
            pl.BlockSpec(memory_space=pltpu.MemorySpace.VMEM),
            pl.BlockSpec(memory_space=pltpu.MemorySpace.VMEM),
            pl.BlockSpec(memory_space=pltpu.MemorySpace.SMEM),
        ],
        out_specs=pl.BlockSpec(memory_space=pltpu.MemorySpace.VMEM),
    )(x_flat, w_cols, b_flat)

    # Contiguous expand only -> free.
    return out_flat.reshape(N, Cout, H, W)


def _reference_conv(x_nchw, weight_hwio, bias):
    """Pure-JAX reference (lax conv) for correctness checking."""
    w_oihw = jnp.transpose(weight_hwio, (3, 2, 0, 1))
    out = lax.conv_general_dilated(
        x_nchw, w_oihw, window_strides=(1, 1), padding=((1, 1), (1, 1)),
        dimension_numbers=("NCHW", "OIHW", "NCHW"))
    return out + bias.reshape(1, -1, 1, 1)


if __name__ == "__main__":
    # Small shapes consistent with the module: batch=2, channels=4, spatial=16.
    N, C, H, W = 2, 4, 16, 16
    Cout = C // 2

    key = jax.random.PRNGKey(0)
    kx, kw, kb = jax.random.split(key, 3)
    x = jax.random.normal(kx, (N, C, H, W), dtype=jnp.float32)
    # Deterministic synthetic parameters (Conv2d(C, C//2, 3, 1, 1) shapes), HWIO.
    weight = jax.random.normal(kw, (3, 3, C, Cout), dtype=jnp.float32) * 0.1
    bias = jax.random.normal(kb, (Cout,), dtype=jnp.float32) * 0.1

    out = jax.block_until_ready(simple_gate_forward(x, weight, bias))
    ref = jax.block_until_ready(_reference_conv(x, weight, bias))

    assert out.shape == (N, Cout, H, W)
    assert jnp.allclose(out, ref, atol=1e-4, rtol=1e-4), \
        float(jnp.max(jnp.abs(out - ref)))

    print("KERNEL_OK")
</pallas_src>

<mosaic_0001>
module attributes {stable_mosaic.version = 11 : i64} {
  func.func @_conv3x3_kernel(%arg0: memref<8x256xf32, #tpu.memory_space<vmem>>, %arg1: memref<8x18xf32, #tpu.memory_space<vmem>>, %arg2: memref<2xf32, #tpu.memory_space<smem>>, %arg3: memref<4x256xf32, #tpu.memory_space<vmem>>) attributes {dimension_semantics = [], scalar_prefetch = 0 : i64, scratch_operands = 0 : i64, tpu.core_type = #tpu.core_type<tc>} {
    %c0 = arith.constant 0 : index
    %c0_0 = arith.constant 0 : index
    %0 = vector.load %arg0[%c0, %c0_0] : memref<8x256xf32, #tpu.memory_space<vmem>>, vector<8x256xf32>
    %1 = tpu.iota {dimensions = array<i32: 1>} : vector<8x256xi32>
    %c15_i32 = arith.constant 15 : i32
    %2 = vector.broadcast %c15_i32 : i32 to vector<8x256xi32>
    %3 = arith.andi %1, %2 : vector<8x256xi32>
    %c16_i32 = arith.constant 16 : i32
    %4 = vector.broadcast %c16_i32 : i32 to vector<8x256xi32>
    %5 = arith.cmpi sge, %1, %4 : vector<8x256xi32>
    %c240_i32 = arith.constant 240 : i32
    %6 = vector.broadcast %c240_i32 : i32 to vector<8x256xi32>
    %7 = arith.cmpi slt, %1, %6 : vector<8x256xi32>
    %c1_i32 = arith.constant 1 : i32
    %8 = vector.broadcast %c1_i32 : i32 to vector<8x256xi32>
    %9 = arith.cmpi sge, %3, %8 : vector<8x256xi32>
    %c15_i32_1 = arith.constant 15 : i32
    %10 = vector.broadcast %c15_i32_1 : i32 to vector<8x256xi32>
    %11 = arith.cmpi slt, %3, %10 : vector<8x256xi32>
    %cst = arith.constant 0.000000e+00 : f32
    %12 = vector.broadcast %cst : f32 to vector<8x256xf32>
    %cst_2 = arith.constant 0.000000e+00 : f32
    %13 = vector.broadcast %cst_2 : f32 to vector<8x256xf32>
    %14 = arith.andi %5, %9 : vector<8x256xi1>
    %c17_i32 = arith.constant 17 : i32
    %15 = tpu.dynamic_rotate %0 by %c17_i32 dim 1 : vector<8x256xf32>, i32 -> vector<8x256xf32>
    %cst_3 = arith.constant 0.000000e+00 : f32
    %16 = vector.broadcast %cst_3 : f32 to vector<8x256xf32>
    %17 = arith.select %14, %15, %16 : vector<8x256xi1>, vector<8x256xf32>
    %c0_4 = arith.constant 0 : index
    %c0_5 = arith.constant 0 : index
    %18 = vector.load %arg1[%c0_4, %c0_5] : memref<8x18xf32, #tpu.memory_space<vmem>>, vector<8x1xf32>
    %19 = vector.broadcast %18 : vector<8x1xf32> to vector<8x256xf32>
    %20 = arith.mulf %17, %19 : vector<8x256xf32>
    %21 = arith.addf %12, %20 : vector<8x256xf32>
    %c0_6 = arith.constant 0 : index
    %c1 = arith.constant 1 : index
    %22 = vector.load %arg1[%c0_6, %c1] : memref<8x18xf32, #tpu.memory_space<vmem>>, vector<8x1xf32>
    %23 = vector.broadcast %22 : vector<8x1xf32> to vector<8x256xf32>
    %24 = arith.mulf %17, %23 : vector<8x256xf32>
    %25 = arith.addf %13, %24 : vector<8x256xf32>
    %c16_i32_7 = arith.constant 16 : i32
    %26 = tpu.dynamic_rotate %0 by %c16_i32_7 dim 1 : vector<8x256xf32>, i32 -> vector<8x256xf32>
    %cst_8 = arith.constant 0.000000e+00 : f32
    %27 = vector.broadcast %cst_8 : f32 to vector<8x256xf32>
    %28 = arith.select %5, %26, %27 : vector<8x256xi1>, vector<8x256xf32>
    %c0_9 = arith.constant 0 : index
    %c2 = arith.constant 2 : index
    %29 = vector.load %arg1[%c0_9, %c2] : memref<8x18xf32, #tpu.memory_space<vmem>>, vector<8x1xf32>
    %30 = vector.broadcast %29 : vector<8x1xf32> to vector<8x256xf32>
    %31 = arith.mulf %28, %30 : vector<8x256xf32>
    %32 = arith.addf %21, %31 : vector<8x256xf32>
    %c0_10 = arith.constant 0 : index
    %c3 = arith.constant 3 : index
    %33 = vector.load %arg1[%c0_10, %c3] : memref<8x18xf32, #tpu.memory_space<vmem>>, vector<8x1xf32>
    %34 = vector.broadcast %33 : vector<8x1xf32> to vector<8x256xf32>
    %35 = arith.mulf %28, %34 : vector<8x256xf32>
    %36 = arith.addf %25, %35 : vector<8x256xf32>
    %37 = arith.andi %5, %11 : vector<8x256xi1>
    %c15_i32_11 = arith.constant 15 : i32
    %38 = tpu.dynamic_rotate %0 by %c15_i32_11 dim 1 : vector<8x256xf32>, i32 -> vector<8x256xf32>
    %cst_12 = arith.constant 0.000000e+00 : f32
    %39 = vector.broadcast %cst_12 : f32 to vector<8x256xf32>
    %40 = arith.select %37, %38, %39 : vector<8x256xi1>, vector<8x256xf32>
    %c0_13 = arith.constant 0 : index
    %c4 = arith.constant 4 : index
    %41 = vector.load %arg1[%c0_13, %c4] : memref<8x18xf32, #tpu.memory_space<vmem>>, vector<8x1xf32>
    %42 = vector.broadcast %41 : vector<8x1xf32> to vector<8x256xf32>
    %43 = arith.mulf %40, %42 : vector<8x256xf32>
    %44 = arith.addf %32, %43 : vector<8x256xf32>
    %c0_14 = arith.constant 0 : index
    %c5 = arith.constant 5 : index
    %45 = vector.load %arg1[%c0_14, %c5] : memref<8x18xf32, #tpu.memory_space<vmem>>, vector<8x1xf32>
    %46 = vector.broadcast %45 : vector<8x1xf32> to vector<8x256xf32>
    %47 = arith.mulf %40, %46 : vector<8x256xf32>
    %48 = arith.addf %36, %47 : vector<8x256xf32>
    %c1_i32_15 = arith.constant 1 : i32
    %49 = tpu.dynamic_rotate %0 by %c1_i32_15 dim 1 : vector<8x256xf32>, i32 -> vector<8x256xf32>
    %cst_16 = arith.constant 0.000000e+00 : f32
    %50 = vector.broadcast %cst_16 : f32 to vector<8x256xf32>
    %51 = arith.select %9, %49, %50 : vector<8x256xi1>, vector<8x256xf32>
    %c0_17 = arith.constant 0 : index
    %c6 = arith.constant 6 : index
    %52 = vector.load %arg1[%c0_17, %c6] : memref<8x18xf32, #tpu.memory_space<vmem>>, vector<8x1xf32>
    %53 = vector.broadcast %52 : vector<8x1xf32> to vector<8x256xf32>
    %54 = arith.mulf %51, %53 : vector<8x256xf32>
    %55 = arith.addf %44, %54 : vector<8x256xf32>
    %c0_18 = arith.constant 0 : index
    %c7 = arith.constant 7 : index
    %56 = vector.load %arg1[%c0_18, %c7] : memref<8x18xf32, #tpu.memory_space<vmem>>, vector<8x1xf32>
    %57 = vector.broadcast %56 : vector<8x1xf32> to vector<8x256xf32>
    %58 = arith.mulf %51, %57 : vector<8x256xf32>
    %59 = arith.addf %48, %58 : vector<8x256xf32>
    %c0_19 = arith.constant 0 : index
    %c8 = arith.constant 8 : index
    %60 = vector.load %arg1[%c0_19, %c8] : memref<8x18xf32, #tpu.memory_space<vmem>>, vector<8x1xf32>
    %61 = vector.broadcast %60 : vector<8x1xf32> to vector<8x256xf32>
    %62 = arith.mulf %0, %61 : vector<8x256xf32>
    %63 = arith.addf %55, %62 : vector<8x256xf32>
    %c0_20 = arith.constant 0 : index
    %c9 = arith.constant 9 : index
    %64 = vector.load %arg1[%c0_20, %c9] : memref<8x18xf32, #tpu.memory_space<vmem>>, vector<8x1xf32>
    %65 = vector.broadcast %64 : vector<8x1xf32> to vector<8x256xf32>
    %66 = arith.mulf %0, %65 : vector<8x256xf32>
    %67 = arith.addf %59, %66 : vector<8x256xf32>
    %c255_i32 = arith.constant 255 : i32
    %68 = tpu.dynamic_rotate %0 by %c255_i32 dim 1 : vector<8x256xf32>, i32 -> vector<8x256xf32>
    %cst_21 = arith.constant 0.000000e+00 : f32
    %69 = vector.broadcast %cst_21 : f32 to vector<8x256xf32>
    %70 = arith.select %11, %68, %69 : vector<8x256xi1>, vector<8x256xf32>
    %c0_22 = arith.constant 0 : index
    %c10 = arith.constant 10 : index
    %71 = vector.load %arg1[%c0_22, %c10] : memref<8x18xf32, #tpu.memory_space<vmem>>, vector<8x1xf32>
    %72 = vector.broadcast %71 : vector<8x1xf32> to vector<8x256xf32>
    %73 = arith.mulf %70, %72 : vector<8x256xf32>
    %74 = arith.addf %63, %73 : vector<8x256xf32>
    %c0_23 = arith.constant 0 : index
    %c11 = arith.constant 11 : index
    %75 = vector.load %arg1[%c0_23, %c11] : memref<8x18xf32, #tpu.memory_space<vmem>>, vector<8x1xf32>
    %76 = vector.broadcast %75 : vector<8x1xf32> to vector<8x256xf32>
    %77 = arith.mulf %70, %76 : vector<8x256xf32>
    %78 = arith.addf %67, %77 : vector<8x256xf32>
    %79 = arith.andi %7, %9 : vector<8x256xi1>
    %c241_i32 = arith.constant 241 : i32
    %80 = tpu.dynamic_rotate %0 by %c241_i32 dim 1 : vector<8x256xf32>, i32 -> vector<8x256xf32>
    %cst_24 = arith.constant 0.000000e+00 : f32
    %81 = vector.broadcast %cst_24 : f32 to vector<8x256xf32>
    %82 = arith.select %79, %80, %81 : vector<8x256xi1>, vector<8x256xf32>
    %c0_25 = arith.constant 0 : index
    %c12 = arith.constant 12 : index
    %83 = vector.load %arg1[%c0_25, %c12] : memref<8x18xf32, #tpu.memory_space<vmem>>, vector<8x1xf32>
    %84 = vector.broadcast %83 : vector<8x1xf32> to vector<8x256xf32>
    %85 = arith.mulf %82, %84 : vector<8x256xf32>
    %86 = arith.addf %74, %85 : vector<8x256xf32>
    %c0_26 = arith.constant 0 : index
    %c13 = arith.constant 13 : index
    %87 = vector.load %arg1[%c0_26, %c13] : memref<8x18xf32, #tpu.memory_space<vmem>>, vector<8x1xf32>
    %88 = vector.broadcast %87 : vector<8x1xf32> to vector<8x256xf32>
    %89 = arith.mulf %82, %88 : vector<8x256xf32>
    %90 = arith.addf %78, %89 : vector<8x256xf32>
    %c240_i32_27 = arith.constant 240 : i32
    %91 = tpu.dynamic_rotate %0 by %c240_i32_27 dim 1 : vector<8x256xf32>, i32 -> vector<8x256xf32>
    %cst_28 = arith.constant 0.000000e+00 : f32
    %92 = vector.broadcast %cst_28 : f32 to vector<8x256xf32>
    %93 = arith.select %7, %91, %92 : vector<8x256xi1>, vector<8x256xf32>
    %c0_29 = arith.constant 0 : index
    %c14 = arith.constant 14 : index
    %94 = vector.load %arg1[%c0_29, %c14] : memref<8x18xf32, #tpu.memory_space<vmem>>, vector<8x1xf32>
    %95 = vector.broadcast %94 : vector<8x1xf32> to vector<8x256xf32>
    %96 = arith.mulf %93, %95 : vector<8x256xf32>
    %97 = arith.addf %86, %96 : vector<8x256xf32>
    %c0_30 = arith.constant 0 : index
    %c15 = arith.constant 15 : index
    %98 = vector.load %arg1[%c0_30, %c15] : memref<8x18xf32, #tpu.memory_space<vmem>>, vector<8x1xf32>
    %99 = vector.broadcast %98 : vector<8x1xf32> to vector<8x256xf32>
    %100 = arith.mulf %93, %99 : vector<8x256xf32>
    %101 = arith.addf %90, %100 : vector<8x256xf32>
    %102 = arith.andi %7, %11 : vector<8x256xi1>
    %c239_i32 = arith.constant 239 : i32
    %103 = tpu.dynamic_rotate %0 by %c239_i32 dim 1 : vector<8x256xf32>, i32 -> vector<8x256xf32>
    %cst_31 = arith.constant 0.000000e+00 : f32
    %104 = vector.broadcast %cst_31 : f32 to vector<8x256xf32>
    %105 = arith.select %102, %103, %104 : vector<8x256xi1>, vector<8x256xf32>
    %c0_32 = arith.constant 0 : index
    %c16 = arith.constant 16 : index
    %106 = vector.load %arg1[%c0_32, %c16] : memref<8x18xf32, #tpu.memory_space<vmem>>, vector<8x1xf32>
    %107 = vector.broadcast %106 : vector<8x1xf32> to vector<8x256xf32>
    %108 = arith.mulf %105, %107 : vector<8x256xf32>
    %109 = arith.addf %97, %108 : vector<8x256xf32>
    %c0_33 = arith.constant 0 : index
    %c17 = arith.constant 17 : index
    %110 = vector.load %arg1[%c0_33, %c17] : memref<8x18xf32, #tpu.memory_space<vmem>>, vector<8x1xf32>
    %111 = vector.broadcast %110 : vector<8x1xf32> to vector<8x256xf32>
    %112 = arith.mulf %105, %111 : vector<8x256xf32>
    %113 = arith.addf %101, %112 : vector<8x256xf32>
    %114 = vector.extract_strided_slice %109 {offsets = [0, 0], sizes = [4, 256], strides = [1, 1]} : vector<8x256xf32> to vector<4x256xf32>
    %cst_34 = arith.constant dense<0.000000e+00> : vector<256xf32>
    %115 = vector.multi_reduction <add>, %114, %cst_34 [0] : vector<4x256xf32> to vector<256xf32>
    %116 = vector.shape_cast %115 : vector<256xf32> to vector<1x256xf32>
    %c0_35 = arith.constant 0 : index
    %117 = memref.load %arg2[%c0_35] : memref<2xf32, #tpu.memory_space<smem>>
    %118 = vector.broadcast %117 : f32 to vector<1x256xf32>
    %119 = arith.addf %116, %118 : vector<1x256xf32>
    %c0_36 = arith.constant 0 : index
    %c0_37 = arith.constant 0 : index
    %120 = vector.load %arg3[%c0_36, %c0_37] : memref<4x256xf32, #tpu.memory_space<vmem>>, vector<1x256xf32>
    tpu.vector_store %arg3[%c0_36, %c0_37], %119 {strides = array<i32>} : memref<4x256xf32, #tpu.memory_space<vmem>>, vector<1x256xf32>,
    %121 = vector.extract_strided_slice %113 {offsets = [0, 0], sizes = [4, 256], strides = [1, 1]} : vector<8x256xf32> to vector<4x256xf32>
    %cst_38 = arith.constant dense<0.000000e+00> : vector<256xf32>
    %122 = vector.multi_reduction <add>, %121, %cst_38 [0] : vector<4x256xf32> to vector<256xf32>
    %123 = vector.shape_cast %122 : vector<256xf32> to vector<1x256xf32>
    %c1_39 = arith.constant 1 : index
    %124 = memref.load %arg2[%c1_39] : memref<2xf32, #tpu.memory_space<smem>>
    %125 = vector.broadcast %124 : f32 to vector<1x256xf32>
    %126 = arith.addf %123, %125 : vector<1x256xf32>
    %c1_40 = arith.constant 1 : index
    %c0_41 = arith.constant 0 : index
    %127 = vector.load %arg3[%c1_40, %c0_41] : memref<4x256xf32, #tpu.memory_space<vmem>>, vector<1x256xf32>
    tpu.vector_store %arg3[%c1_40, %c0_41], %126 {strides = array<i32>} : memref<4x256xf32, #tpu.memory_space<vmem>>, vector<1x256xf32>,
    %128 = vector.extract_strided_slice %109 {offsets = [4, 0], sizes = [4, 256], strides = [1, 1]} : vector<8x256xf32> to vector<4x256xf32>
    %cst_42 = arith.constant dense<0.000000e+00> : vector<256xf32>
    %129 = vector.multi_reduction <add>, %128, %cst_42 [0] : vector<4x256xf32> to vector<256xf32>
    %130 = vector.shape_cast %129 : vector<256xf32> to vector<1x256xf32>
    %c0_43 = arith.constant 0 : index
    %131 = memref.load %arg2[%c0_43] : memref<2xf32, #tpu.memory_space<smem>>
    %132 = vector.broadcast %131 : f32 to vector<1x256xf32>
    %133 = arith.addf %130, %132 : vector<1x256xf32>
    %c2_44 = arith.constant 2 : index
    %c0_45 = arith.constant 0 : index
    %134 = vector.load %arg3[%c2_44, %c0_45] : memref<4x256xf32, #tpu.memory_space<vmem>>, vector<1x256xf32>
    tpu.vector_store %arg3[%c2_44, %c0_45], %133 {strides = array<i32>} : memref<4x256xf32, #tpu.memory_space<vmem>>, vector<1x256xf32>,
    %135 = vector.extract_strided_slice %113 {offsets = [4, 0], sizes = [4, 256], strides = [1, 1]} : vector<8x256xf32> to vector<4x256xf32>
    %cst_46 = arith.constant dense<0.000000e+00> : vector<256xf32>
    %136 = vector.multi_reduction <add>, %135, %cst_46 [0] : vector<4x256xf32> to vector<256xf32>
    %137 = vector.shape_cast %136 : vector<256xf32> to vector<1x256xf32>
    %c1_47 = arith.constant 1 : index
    %138 = memref.load %arg2[%c1_47] : memref<2xf32, #tpu.memory_space<smem>>
    %139 = vector.broadcast %138 : f32 to vector<1x256xf32>
    %140 = arith.addf %137, %139 : vector<1x256xf32>
    %c3_48 = arith.constant 3 : index
    %c0_49 = arith.constant 0 : index
    %141 = vector.load %arg3[%c3_48, %c0_49] : memref<4x256xf32, #tpu.memory_space<vmem>>, vector<1x256xf32>
    tpu.vector_store %arg3[%c3_48, %c0_49], %140 {strides = array<i32>} : memref<4x256xf32, #tpu.memory_space<vmem>>, vector<1x256xf32>,
    return
  }
}

</mosaic_0001>

<llo_original>
// kernel: tpu_custom_call.1
$region0: #{tpu_custom_call.1}
  #allocation0 [shape = 'u32[]', space=smem, size = 0x4, offset = 0x4, fixed_abs, tag = 'smem constant byte address 0x4 - core index']
  #allocation1 [shape = 'u32[144,128]{1,0:T(1,128)}', space=vmem, size = 0x12000, scoped, tag = 'internal scratch']
  %s0 = inlined_call_operand.hbm [shape: f32[8,256], index: 0, kind: input, shape index: {}]
  %s1 = inlined_call_operand.hbm [shape: f32[8,18], index: 1, kind: input, shape index: {}]
  %s2 = inlined_call_operand.vmem [shape: f32[2], index: 2, kind: input, shape index: {}]
  %s3 = inlined_call_operand.hbm [shape: f32[4,256], index: 3, kind: output, shape index: {}]
  %s4 = sld [smem:[#allocation0]]
  $region34: #{tpu_custom_call.1} parent=0
    _
  %s6 = ssub.s32 1, %s4
  %s7 = scalar_select 0, %s6, %s4
  $region1: #{tpu_custom_call.1} parent=0
    #allocation2 [shape = 'u8[8192]{0}', space=vmem, size = 0x2000, scoped, tag = 'input window, operand 0, single buffered']
    #allocation3 [shape = 's32[1]{0}', space=sflag, size = 0x4, scoped, tag = 'scoped memory for tpu_custom_call.1']
    #allocation4 [shape = 's32[1]{0}', space=sflag, size = 0x4, scoped, tag = 'scoped memory for tpu_custom_call.1']
    #allocation5 [shape = 's32[1]{0}', space=sflag, size = 0x4, scoped, tag = 'scoped memory for tpu_custom_call.1']
    #allocation6 [shape = 'u8[4096]{0}', space=vmem, size = 0x1000, scoped, tag = 'input window, operand 1, single buffered']
    #allocation7 [shape = 's32[1]{0}', space=sflag, size = 0x4, scoped, tag = 'scoped memory for tpu_custom_call.1']
    #allocation8 [shape = 'u8[512]{0}', space=smem, size = 0x200, scoped, tag = 'input window, operand 2, single buffered']
    #allocation9 [shape = 'u8[4096]{0}', space=vmem, size = 0x1000, scoped, tag = 'output window, operand 0, single buffered']
    %8 = vsyncpa [#allocation3], 0
    %9 = vsyncpa [#allocation7], 0
    %10 = vsyncpa [#allocation5], 0
    %11 = vsyncpa [#allocation4], 0
    // Predicated region
    $region2: #{tpu_custom_call.1} parent=1 // pred_check
      _
    $region3: #{tpu_custom_call.1} parent=1 // pred_check_branch
      %13 = sbr.rel (0) target = $region5
    $region4: #{tpu_custom_call.1} parent=1 // pred_region
      %s15 = ssub.s32 256, 256
      %16 = vsyncadd [#allocation3], %s15
      %s18 = sshll.u32 [#allocation2], 4
      %s19 = int_to_ptr.vmem [resolvable:$true] %s18
      %21 = dma.hbm_to_vmem [thread:$0]  %s0, 256, %s19, [#allocation3]
    $region5: #{tpu_custom_call.1} parent=1 // pred_fallthru
      _
    // Predicated region
    $region6: #{tpu_custom_call.1} parent=1 // pred_check
      _
    $region7: #{tpu_custom_call.1} parent=1 // pred_check_branch
      %23 = sbr.rel (0) target = $region9
    $region8: #{tpu_custom_call.1} parent=1 // pred_region
      %s25 = ssub.s32 128, 128
      %26 = vsyncadd [#allocation7], %s25
      %s28 = sshll.u32 [#allocation6], 4
      %s29 = int_to_ptr.vmem [resolvable:$true] %s28
      %31 = dma.hbm_to_vmem [thread:$0]  %s1, 128, %s29, [#allocation7]
    $region9: #{tpu_custom_call.1} parent=1 // pred_fallthru
      _
    // Predicated region
    $region10: #{tpu_custom_call.1} parent=1 // pred_check
      _
    $region11: #{tpu_custom_call.1} parent=1 // pred_check_branch
      %33 = sbr.rel (0) target = $region13
    $region12: #{tpu_custom_call.1} parent=1 // pred_region
      %s35 = ssub.s32 16, 16
      %36 = vsyncadd [#allocation5], %s35
      %s38 = sshll.u32 %s2, 4
      %s39 = int_to_ptr.vmem [resolvable:$true] %s38
      %41 = dma.vmem_to_smem %s39, 16, [#allocation8], [#allocation5]
    $region13: #{tpu_custom_call.1} parent=1 // pred_fallthru
      _
    // Predicated region
    $region14: #{tpu_custom_call.1} parent=1 // pred_check
      _
    $region15: #{tpu_custom_call.1} parent=1 // pred_check_branch
      %43 = sbr.rel (0) target = $region17
    $region16: #{tpu_custom_call.1} parent=1 // pred_region
      %44 = dma.done [#allocation3], 256
    $region17: #{tpu_custom_call.1} parent=1 // pred_fallthru
      _
    // Predicated region
    $region18: #{tpu_custom_call.1} parent=1 // pred_check
      _
    $region19: #{tpu_custom_call.1} parent=1 // pred_check_branch
      %46 = sbr.rel (0) target = $region21
    $region20: #{tpu_custom_call.1} parent=1 // pred_region
      %47 = dma.done [#allocation7], 128
    $region21: #{tpu_custom_call.1} parent=1 // pred_fallthru
      _
    // Predicated region
    $region22: #{tpu_custom_call.1} parent=1 // pred_check
      _
    $region23: #{tpu_custom_call.1} parent=1 // pred_check_branch
      %49 = sbr.rel (0) target = $region25
    $region24: #{tpu_custom_call.1} parent=1 // pred_region
      %50 = dma.done [#allocation5], 16
    $region25: #{tpu_custom_call.1} parent=1 // pred_fallthru
      _
    %51 = sfence
    %v52 = vld [vmem:[#allocation2] sm:$0xff]
    %v53 = vld [vmem:[#allocation2 + $0x8] sm:$0xff]
    %v54 = vlaneseq
    %v55 = vand.u32 %v54, 127
    %v56 = vadd.s32 %v55, 128
    %v57 = vand.u32 %v55, 15
    %v58 = vand.u32 %v56, 15
    %vm59 = vcmp.ge.s32.totalorder %v55, 16
    %vm60 = vcmp.ge.s32.totalorder %v56, 16
    %vm61 = vcmp.lt.s32.totalorder %v55, 240
    %vm62 = vcmp.lt.s32.totalorder %v56, 240
    %vm63 = vcmp.ge.s32.totalorder %v57, 1
    %vm64 = vcmp.ge.s32.totalorder %v58, 1
    %vm65 = vcmp.lt.s32.totalorder %v57, 15
    %vm66 = vcmp.lt.s32.totalorder %v58, 15
    %vm67 = vmand %vm59, %vm63
    %vm68 = vmand %vm60, %vm64
    %69 = vrot.lane.b32.xlu0 %v52, 17
    %v70 = vpop.permute.xlu0 %69
    %71 = vrot.lane.b32.xlu0 %v53, 17
    %v72 = vpop.permute.xlu0 %71
    %vm73 = vcmp.lt.s32.totalorder %v55, 17
    %v74 = vsel %vm73, %v70, %v72
    %v75 = vsel %vm73, %v72, %v70
    %v76 = vsel %vm67, %v75, 0.0
    %v77 = vsel %vm68, %v74, 0.0
    %v78 = vld [vmem:[#allocation6] sm:$0xff]
    %80 = vset.pattern.permute.xlu0 0
    %81 = vperm.xlu0 %80, %v78
    %v82 = vpop.permute.xlu0 %81
    %v84 = vmul.f32 %v76, %v82
    %v85 = vmul.f32 %v77, %v82
    %v86 = vadd.f32 %v84, 0.0
    %v87 = vadd.f32 %v85, 0.0
    %88 = vset.pattern.permute.xlu0 1
    %89 = vperm.xlu0 %88, %v78
    %v90 = vpop.permute.xlu0 %89
    %v92 = vmul.f32 %v76, %v90
    %v93 = vmul.f32 %v77, %v90
    %v94 = vadd.f32 %v92, 0.0
    %v95 = vadd.f32 %v93, 0.0
    %96 = vrot.lane.b32.xlu0 %v52, 16
    %v97 = vpop.permute.xlu0 %96
    %98 = vrot.lane.b32.xlu0 %v53, 16
    %v99 = vpop.permute.xlu0 %98
    %vm100 = vcmp.lt.s32.totalorder %v55, 16
    %v101 = vsel %vm100, %v97, %v99
    %v102 = vsel %vm100, %v99, %v97
    %v103 = vsel %vm59, %v102, 0.0
    %v104 = vsel %vm60, %v101, 0.0
    %105 = vset.pattern.permute.xlu0 2
    %106 = vperm.xlu0 %105, %v78
    %v107 = vpop.permute.xlu0 %106
    %v109 = vmul.f32 %v103, %v107
    %v110 = vmul.f32 %v104, %v107
    %v111 = vadd.f32 %v86, %v109
    %v112 = vadd.f32 %v87, %v110
    %113 = vset.pattern.permute.xlu0 3
    %114 = vperm.xlu0 %113, %v78
    %v115 = vpop.permute.xlu0 %114
    %v117 = vmul.f32 %v103, %v115
    %v118 = vmul.f32 %v104, %v115
    %v119 = vadd.f32 %v94, %v117
    %v120 = vadd.f32 %v95, %v118
    %vm121 = vmand %vm59, %vm65
    %vm122 = vmand %vm60, %vm66
    %123 = vrot.lane.b32.xlu0 %v52, 15
    %v124 = vpop.permute.xlu0 %123
    %125 = vrot.lane.b32.xlu0 %v53, 15
    %v126 = vpop.permute.xlu0 %125
    %vm127 = vcmp.lt.s32.totalorder %v55, 15
    %v128 = vsel %vm127, %v124, %v126
    %v129 = vsel %vm127, %v126, %v124
    %v130 = vsel %vm121, %v129, 0.0
    %v131 = vsel %vm122, %v128, 0.0
    %132 = vset.pattern.permute.xlu0 4
    %133 = vperm.xlu0 %132, %v78
    %v134 = vpop.permute.xlu0 %133
    %v136 = vmul.f32 %v130, %v134
    %v137 = vmul.f32 %v131, %v134
    %v138 = vadd.f32 %v111, %v136
    %v139 = vadd.f32 %v112, %v137
    %140 = vset.pattern.permute.xlu0 5
    %141 = vperm.xlu0 %140, %v78
    %v142 = vpop.permute.xlu0 %141
    %v144 = vmul.f32 %v130, %v142
    %v145 = vmul.f32 %v131, %v142
    %v146 = vadd.f32 %v119, %v144
    %v147 = vadd.f32 %v120, %v145
    %148 = vrot.lane.b32.xlu0 %v52, 1
    %v149 = vpop.permute.xlu0 %148
    %150 = vrot.lane.b32.xlu0 %v53, 1
    %v151 = vpop.permute.xlu0 %150
    %vm152 = vcmp.lt.s32.totalorder %v55, 1
    %v153 = vsel %vm152, %v149, %v151
    %v154 = vsel %vm152, %v151, %v149
    %v155 = vsel %vm63, %v154, 0.0
    %v156 = vsel %vm64, %v153, 0.0
    %157 = vset.pattern.permute.xlu0 6
    %158 = vperm.xlu0 %157, %v78
    %v159 = vpop.permute.xlu0 %158
    %v161 = vmul.f32 %v155, %v159
    %v162 = vmul.f32 %v156, %v159
    %v163 = vadd.f32 %v138, %v161
    %v164 = vadd.f32 %v139, %v162
    %165 = vset.pattern.permute.xlu0 7
    %166 = vperm.xlu0 %165, %v78
    %v167 = vpop.permute.xlu0 %166
    %v169 = vmul.f32 %v155, %v167
    %v170 = vmul.f32 %v156, %v167
    %v171 = vadd.f32 %v146, %v169
    %v172 = vadd.f32 %v147, %v170
    %173 = vset.pattern.permute.xlu0 8
    %174 = vperm.xlu0 %173, %v78
    %v175 = vpop.permute.xlu0 %174
    %v177 = vmul.f32 %v52, %v175
    %v178 = vmul.f32 %v53, %v175
    %v179 = vadd.f32 %v163, %v177
    %v180 = vadd.f32 %v164, %v178
    %181 = vset.pattern.permute.xlu0 9
    %182 = vperm.xlu0 %181, %v78
    %v183 = vpop.permute.xlu0 %182
    %v185 = vmul.f32 %v52, %v183
    %v186 = vmul.f32 %v53, %v183
    %v187 = vadd.f32 %v171, %v185
    %v188 = vadd.f32 %v172, %v186
    %189 = vrot.lane.b32.xlu0 %v52, 127
    %v190 = vpop.permute.xlu0 %189
    %191 = vrot.lane.b32.xlu0 %v53, 127
    %v192 = vpop.permute.xlu0 %191
    %vm193 = vcmp.lt.s32.totalorder %v55, 127
    %v194 = vsel %vm193, %v190, %v192
    %v195 = vsel %vm193, %v192, %v190
    %v196 = vsel %vm65, %v194, 0.0
    %v197 = vsel %vm66, %v195, 0.0
    %198 = vset.pattern.permute.xlu0 10
    %199 = vperm.xlu0 %198, %v78
    %v200 = vpop.permute.xlu0 %199
    %v202 = vmul.f32 %v196, %v200
    %v203 = vmul.f32 %v197, %v200
    %v204 = vadd.f32 %v179, %v202
    %v205 = vadd.f32 %v180, %v203
    %206 = vset.pattern.permute.xlu0 11
    %207 = vperm.xlu0 %206, %v78
    %v208 = vpop.permute.xlu0 %207
    %v210 = vmul.f32 %v196, %v208
    %v211 = vmul.f32 %v197, %v208
    %v212 = vadd.f32 %v187, %v210
    %v213 = vadd.f32 %v188, %v211
    %vm214 = vmand %vm61, %vm63
    %vm215 = vmand %vm62, %vm64
    %216 = vrot.lane.b32.xlu0 %v52, 113
    %v217 = vpop.permute.xlu0 %216
    %218 = vrot.lane.b32.xlu0 %v53, 113
    %v219 = vpop.permute.xlu0 %218
    %vm220 = vcmp.lt.s32.totalorder %v55, 113
    %v221 = vsel %vm220, %v217, %v219
    %v222 = vsel %vm220, %v219, %v217
    %v223 = vsel %vm214, %v221, 0.0
    %v224 = vsel %vm215, %v222, 0.0
    %225 = vset.pattern.permute.xlu0 12
    %226 = vperm.xlu0 %225, %v78
    %v227 = vpop.permute.xlu0 %226
    %v229 = vmul.f32 %v223, %v227
    %v230 = vmul.f32 %v224, %v227
    %v231 = vadd.f32 %v204, %v229
    %v232 = vadd.f32 %v205, %v230
    %233 = vset.pattern.permute.xlu0 13
    %234 = vperm.xlu0 %233, %v78
    %v235 = vpop.permute.xlu0 %234
    %v237 = vmul.f32 %v223, %v235
    %v238 = vmul.f32 %v224, %v235
    %v239 = vadd.f32 %v212, %v237
    %v240 = vadd.f32 %v213, %v238
    %241 = vrot.lane.b32.xlu0 %v52, 112
    %v242 = vpop.permute.xlu0 %241
    %243 = vrot.lane.b32.xlu0 %v53, 112
    %v244 = vpop.permute.xlu0 %243
    %vm245 = vcmp.lt.s32.totalorder %v55, 112
    %v246 = vsel %vm245, %v242, %v244
    %v247 = vsel %vm245, %v244, %v242
    %v248 = vsel %vm61, %v246, 0.0
    %v249 = vsel %vm62, %v247, 0.0
    %250 = vset.pattern.permute.xlu0 14
    %251 = vperm.xlu0 %250, %v78
    %v252 = vpop.permute.xlu0 %251
    %v254 = vmul.f32 %v248, %v252
    %v255 = vmul.f32 %v249, %v252
    %v256 = vadd.f32 %v231, %v254
    %v257 = vadd.f32 %v232, %v255
    %258 = vset.pattern.permute.xlu0 15
    %259 = vperm.xlu0 %258, %v78
    %v260 = vpop.permute.xlu0 %259
    %v262 = vmul.f32 %v248, %v260
    %v263 = vmul.f32 %v249, %v260
    %v264 = vadd.f32 %v239, %v262
    %v265 = vadd.f32 %v240, %v263
    %vm266 = vmand %vm61, %vm65
    %vm267 = vmand %vm62, %vm66
    %268 = vrot.lane.b32.xlu0 %v52, 111
    %v269 = vpop.permute.xlu0 %268
    %270 = vrot.lane.b32.xlu0 %v53, 111
    %v271 = vpop.permute.xlu0 %270
    %vm272 = vcmp.lt.s32.totalorder %v55, 111
    %v273 = vsel %vm272, %v269, %v271
    %v274 = vsel %vm272, %v271, %v269
    %v275 = vsel %vm266, %v273, 0.0
    %v276 = vsel %vm267, %v274, 0.0
    %277 = vset.pattern.permute.xlu0 16
    %278 = vperm.xlu0 %277, %v78
    %v279 = vpop.permute.xlu0 %278
    %v281 = vmul.f32 %v275, %v279
    %v282 = vmul.f32 %v276, %v279
    %v283 = vadd.f32 %v256, %v281
    %v284 = vadd.f32 %v257, %v282
    %285 = vset.pattern.permute.xlu0 17
    %286 = vperm.xlu0 %285, %v78
    %v287 = vpop.permute.xlu0 %286
    %v289 = vmul.f32 %v275, %v287
    %v290 = vmul.f32 %v276, %v287
    %v291 = vadd.f32 %v264, %v289
    %v292 = vadd.f32 %v265, %v290
    %vm293 = vcmask 1043456
    %v294 = vsel %vm293, %v283, 0.0
    %v295 = vrot.slane %v294, 4
    %v296 = vadd.f32 %v294, %v295
    %v297 = vrot.slane %v296, 2
    %v298 = vadd.f32 %v296, %v297
    %v299 = vrot.slane %v298, 1
    %v300 = vadd.f32 %v298, %v299
    %v301 = vsel %vm293, %v284, 0.0
    %v302 = vrot.slane %v301, 4
    %v303 = vadd.f32 %v301, %v302
    %v304 = vrot.slane %v303, 2
    %v305 = vadd.f32 %v303, %v304
    %v306 = vrot.slane %v305, 1
    %v307 = vadd.f32 %v305, %v306
    %s308 = sld [smem:[#allocation8]]
    %v309 = vstv %s308
    %v310 = vadd.f32 %v300, %v309
    %v311 = vadd.f32 %v307, %v309
    %v314 = vcombine.low %v310, %v311
    %v316 = vunpack.c.l.s4 1966171168
    %v317 = vunpack.c.0.s8 %v316
    %v318 = vlaneseq
    %v319 = vshrl.u32 %v318, 7
    %v320 = vsub.s32 %v317, %v319
    %v321 = vrot.slane %v314, %v320
    %v323 = vunpack.c.l.s4 1966171168
    %v324 = vunpack.c.0.s8 %v323
    %v325 = vlaneseq
    %v326 = vshrl.u32 %v325, 7
    %v327 = vsub.s32 %v324, %v326
    %v328 = vrot.slane %v321, %v327
    %v330 = vlaneseq
    %vm331 = vcmp.ge.s32.totalorder %v330, 0
    %vm332 = vcmp.lt.s32.totalorder %v330, 256
    %vm333 = vmand %vm331, %vm332
    %334 = vst.msk [vmem:[#allocation9] ss:$4 sm:$0x3] %vm333, %v328
    %v335 = vsel %vm293, %v291, 0.0
    %v336 = vrot.slane %v335, 4
    %v337 = vadd.f32 %v335, %v336
    %v338 = vrot.slane %v337, 2
    %v339 = vadd.f32 %v337, %v338
    %v340 = vrot.slane %v339, 1
    %v341 = vadd.f32 %v339, %v340
    %v342 = vsel %vm293, %v292, 0.0
    %v343 = vrot.slane %v342, 4
    %v344 = vadd.f32 %v342, %v343
    %v345 = vrot.slane %v344, 2
    %v346 = vadd.f32 %v344, %v345
    %v347 = vrot.slane %v346, 1
    %v348 = vadd.f32 %v346, %v347
    %s349 = sld [smem:[#allocation8 + $0x1]]
    %v350 = vstv %s349
    %v351 = vadd.f32 %v341, %v350
    %v352 = vadd.f32 %v348, %v350
    %v355 = vcombine.low %v351, %v352
    %v357 = vunpack.c.l.s4 1966171168
    %v358 = vunpack.c.0.s8 %v357
    %v359 = vlaneseq
    %v360 = vshrl.u32 %v359, 7
    %v361 = vsub.s32 %v358, %v360
    %v362 = vrot.slane %v355, %v361
    %v364 = vunpack.c.l.s4 1966171168
    %v365 = vunpack.c.0.s8 %v364
    %v366 = vlaneseq
    %v367 = vshrl.u32 %v366, 7
    %v368 = vsub.s32 %v365, %v367
    %v369 = vrot.slane %v362, %v368
    %s371 = scalar_lea.vmem [#allocation9], 1
    %372 = vst.msk [vmem:[%s371] ss:$4 sm:$0x3] %vm333, %v369
    %v375 = vrot.slane %v283, 4
    %v376 = vrot.slane %v284, 4
    %v379 = vsel %vm293, %v375, 0.0
    %v380 = vrot.slane %v379, 4
    %v381 = vadd.f32 %v379, %v380
    %v382 = vrot.slane %v381, 2
    %v383 = vadd.f32 %v381, %v382
    %v384 = vrot.slane %v383, 1
    %v385 = vadd.f32 %v383, %v384
    %v386 = vsel %vm293, %v376, 0.0
    %v387 = vrot.slane %v386, 4
    %v388 = vadd.f32 %v386, %v387
    %v389 = vrot.slane %v388, 2
    %v390 = vadd.f32 %v388, %v389
    %v391 = vrot.slane %v390, 1
    %v392 = vadd.f32 %v390, %v391
    %s393 = sld [smem:[#allocation8]]
    %v394 = vstv %s393
    %v395 = vadd.f32 %v385, %v394
    %v396 = vadd.f32 %v392, %v394
    %v399 = vcombine.low %v395, %v396
    %v401 = vunpack.c.l.s4 1966171168
    %v402 = vunpack.c.0.s8 %v401
    %v403 = vlaneseq
    %v404 = vshrl.u32 %v403, 7
    %v405 = vsub.s32 %v402, %v404
    %v406 = vrot.slane %v399, %v405
    %v408 = vunpack.c.l.s4 1966171168
    %v409 = vunpack.c.0.s8 %v408
    %v410 = vlaneseq
    %v411 = vshrl.u32 %v410, 7
    %v412 = vsub.s32 %v409, %v411
    %v413 = vrot.slane %v406, %v412
    %s415 = scalar_lea.vmem [#allocation9], 2
    %416 = vst.msk [vmem:[%s415] ss:$4 sm:$0x3] %vm333, %v413
    %v419 = vrot.slane %v291, 4
    %v420 = vrot.slane %v292, 4
    %v423 = vsel %vm293, %v419, 0.0
    %v424 = vrot.slane %v423, 4
    %v425 = vadd.f32 %v423, %v424
    %v426 = vrot.slane %v425, 2
    %v427 = vadd.f32 %v425, %v426
    %v428 = vrot.slane %v427, 1
    %v429 = vadd.f32 %v427, %v428
    %v430 = vsel %vm293, %v420, 0.0
    %v431 = vrot.slane %v430, 4
    %v432 = vadd.f32 %v430, %v431
    %v433 = vrot.slane %v432, 2
    %v434 = vadd.f32 %v432, %v433
    %v435 = vrot.slane %v434, 1
    %v436 = vadd.f32 %v434, %v435
    %s437 = sld [smem:[#allocation8 + $0x1]]
    %v438 = vstv %s437
    %v439 = vadd.f32 %v429, %v438
    %v440 = vadd.f32 %v436, %v438
    %v443 = vcombine.low %v439, %v440
    %v445 = vunpack.c.l.s4 1966171168
    %v446 = vunpack.c.0.s8 %v445
    %v447 = vlaneseq
    %v448 = vshrl.u32 %v447, 7
    %v449 = vsub.s32 %v446, %v448
    %v450 = vrot.slane %v443, %v449
    %v452 = vunpack.c.l.s4 1966171168
    %v453 = vunpack.c.0.s8 %v452
    %v454 = vlaneseq
    %v455 = vshrl.u32 %v454, 7
    %v456 = vsub.s32 %v453, %v455
    %v457 = vrot.slane %v450, %v456
    %s459 = scalar_lea.vmem [#allocation9], 3
    %460 = vst.msk [vmem:[%s459] ss:$4 sm:$0x3] %vm333, %v457
    // Predicated region
    $region26: #{tpu_custom_call.1} parent=1 // pred_check
      _
    $region27: #{tpu_custom_call.1} parent=1 // pred_check_branch
      %462 = sbr.rel (0) target = $region29
    $region28: #{tpu_custom_call.1} parent=1 // pred_region
      %s464 = ssub.s32 128, 128
      %465 = vsyncadd [#allocation4], %s464
      %s467 = sshll.u32 [#allocation9], 4
      %s468 = int_to_ptr.vmem [resolvable:$true] %s467
      %470 = dma.vmem_to_hbm [thread:$0]  %s468, 128, %s3, [#allocation4]
    $region29: #{tpu_custom_call.1} parent=1 // pred_fallthru
      _
    // Predicated region
    $region30: #{tpu_custom_call.1} parent=1 // pred_check
      _
    $region31: #{tpu_custom_call.1} parent=1 // pred_check_branch
      %472 = sbr.rel (0) target = $region33
    $region32: #{tpu_custom_call.1} parent=1 // pred_region
      %473 = dma.done [#allocation4], 128
    $region33: #{tpu_custom_call.1} parent=1 // pred_fallthru
      _
    %474 = vsyncpa [#allocation3], 1
    %475 = vsyncpa [#allocation7], 1
    %476 = vsyncpa [#allocation4], 1
    %477 = vsyncpa [#allocation5], 1

</llo_original>
